<compile_context>
chip_gen: v7x
topology: tpu7x:2x2x1
jax: 0.10.0
libtpu: 0.0.40
codegen_flags: <defaults>
</compile_context>

<pallas_src>
import functools

import jax
import jax.numpy as jnp
from jax.experimental import pallas as pl
from jax.experimental.pallas import tpu as pltpu


def _round_up(v, m):
    return (v + m - 1) // m * m


def _readout_kernel(x_ref, qt_ref, p_ref, o_ref, acc_ref, *,
                    inv_n, n_valid, node_tile, n_groups, needs_mask):
    """grid = (batch tiles, node tiles); node axis is the innermost reduction."""
    n = pl.program_id(1)

    @pl.when(n == 0)
    def _init():
        acc_ref[...] = jnp.zeros_like(acc_ref)

    xb = x_ref[...].astype(jnp.float32)                      # (TB, TN, Df)
    if needs_mask:
        # Ragged trailing node tile: zero the rows whose global (folded) node
        # index is out of range instead of padding x in HBM.
        node_idx = jax.lax.broadcasted_iota(jnp.int32, xb.shape, 1) + n * node_tile
        xb = jnp.where(node_idx < n_valid, xb, 0.0)
    acc_ref[...] += jnp.sum(xb, axis=1)                      # (TB, Df)

    @pl.when(n == pl.num_programs(1) - 1)
    def _epilogue():
        acc = acc_ref[...]                                   # (TB, Df) = (TB, g*D)
        d = acc.shape[-1] // n_groups
        pooled = acc[:, 0:d]
        for j in range(1, n_groups):                         # fold lane groups back to D
            pooled = pooled + acc[:, j * d:(j + 1) * d]
        pooled = pooled * inv_n                              # mean over the true N nodes

        # z[b, i] = sum_j pooled[b, j] * Q[i, j]   (Q passed pre-transposed)
        z = jax.lax.dot_general(
            pooled, qt_ref[...].astype(jnp.float32),
            dimension_numbers=(((1,), (0,)), ((), ())),
            preferred_element_type=jnp.float32)              # (TB, D)
        h = jnp.maximum(z, 0.0)                              # ReLU on the VPU
        # out[b] = sum_i P[0, i] * h[b, i]  -> VPU multiply + lane reduction
        col = jnp.sum(h * p_ref[...].astype(jnp.float32),
                      axis=-1, keepdims=True)                # (TB, 1)
        o_ref[...] = col.T.reshape(o_ref.shape).astype(o_ref.dtype)


def graph_readout(x, Q, P, *, max_x_block_bytes=None):
    B, N, D = x.shape
    itemsize = jnp.dtype(x.dtype).itemsize

    # ---- fold nodes into lanes when D < 128 (lane / VMEM density win) --------
    g = 1
    if D < 128:
        for cand in range(min(128 // D, N), 0, -1):
            if N % cand == 0:
                g = cand
                break
    Nf, Df = N // g, g * D
    x_f = x.reshape(B, Nf, Df) if g > 1 else x               # free reshape, no extra HBM pass

    # ---- batch tiling: >= 2 blocks on the parallel axis so both v7x cores work
    if B >= 256:
        TB = 128
    elif B >= 16:
        TB = min(B, _round_up(pl.cdiv(B, 2), 8))
    elif B >= 2:
        TB = pl.cdiv(B, 2)
    else:
        TB = 1
    n_btiles = pl.cdiv(B, TB)

    # ---- VMEM budget (lane-padding aware), per TPU generation ----------------
    try:
        vmem_cap = int(pltpu.get_tpu_info().vmem_capacity_bytes)
    except Exception:
        vmem_cap = 64 * 1024 * 1024                          # conservative (v7x-sized)
    vmem_limit = min(vmem_cap * 3 // 4, 100 * 1024 * 1024)

    lanes = _round_up(Df, 128)
    param_bytes = 2 * (_round_up(D, 8) + 8) * _round_up(D, 128) * 4   # Q^T + P, double-buffered
    acc_bytes = _round_up(TB, 8) * lanes * 4
    out_bytes = 2 * 8 * _round_up(TB, 128) * 4
    slack = 2 * 1024 * 1024
    hard_cap = (16 if vmem_cap <= 64 * 1024 * 1024 else 32) * 1024 * 1024
    budget = min(hard_cap,
                 max(1 << 20,
                     (vmem_limit - param_bytes - acc_bytes - out_bytes - slack) // 2))
    if max_x_block_bytes is not None:                        # test / tuning override
        budget = max_x_block_bytes

    # ---- node tile: biggest that fits, aligned to the dtype's sublane packing
    sub_pack = {4: 8, 2: 16, 1: 32}.get(itemsize, 8)
    bytes_per_node = TB * lanes * itemsize                   # one folded node row, lane-padded
    tn_budget = max(1, budget // bytes_per_node)
    if tn_budget >= Nf:
        TN = Nf
    else:
        TN = max(sub_pack, (tn_budget // sub_pack) * sub_pack)
    n_ntiles = pl.cdiv(Nf, TN)
    needs_mask = (Nf % TN) != 0

    grid = (n_btiles, n_ntiles)

    cost = pl.CostEstimate(
        flops=B * N * D + 2 * B * D * D + 3 * B * D,
        transcendentals=0,
        bytes_accessed=(B * N * D * itemsize
                        + D * D * jnp.dtype(Q.dtype).itemsize
                        + D * jnp.dtype(P.dtype).itemsize
                        + n_btiles * TB * 4),
    )

    kernel = functools.partial(
        _readout_kernel, inv_n=1.0 / N, n_valid=Nf, node_tile=TN,
        n_groups=g, needs_mask=needs_mask)

    out = pl.pallas_call(
        kernel,
        out_shape=jax.ShapeDtypeStruct((n_btiles, 1, TB), jnp.float32),
        grid=grid,
        in_specs=[
            pl.BlockSpec((TB, TN, Df), lambda b, n: (b, n, 0)),   # streamed / pipelined
            pl.BlockSpec((D, D), lambda b, n: (0, 0)),            # Q^T resident in VMEM
            pl.BlockSpec((1, D), lambda b, n: (0, 0)),            # P resident in VMEM
        ],
        out_specs=pl.BlockSpec((1, 1, TB), lambda b, n: (b, 0, 0)),
        scratch_shapes=[pltpu.VMEM((TB, Df), jnp.float32)],
        compiler_params=pltpu.CompilerParams(
            dimension_semantics=("parallel", "arbitrary"),
            vmem_limit_bytes=int(vmem_limit)),
        cost_estimate=cost,
    )(x_f, jnp.transpose(Q), P)

    flat = out.reshape(-1)[:B]
    # Matches torch .squeeze(): (B,) for B > 1, 0-d scalar for B == 1.
    return jnp.squeeze(flat)


def xavier_normal(key, shape):
    fan_out, fan_in = shape[0], shape[1]
    std = (2.0 / (fan_in + fan_out)) ** 0.5
    return std * jax.random.normal(key, shape, dtype=jnp.float32)


if __name__ == "__main__":
    # --- main demo shapes: B graphs, N nodes, node_dim D -----------------------
    B, N, D = 2, 8, 32

    key = jax.random.PRNGKey(0)
    kx, kq, kp = jax.random.split(key, 3)

    x = jax.random.normal(kx, (B, N, D), dtype=jnp.float32)
    Q = xavier_normal(kq, (D, D))      # nn.init.xavier_normal_(empty(D, D))
    P = xavier_normal(kp, (1, D))      # nn.init.xavier_normal_(empty(1, D))

    out = jax.block_until_ready(graph_readout(x, Q, P))

    pooled = jnp.sum(x, axis=1) / N
    ref = (P @ jnp.maximum(Q @ pooled.T, 0.0)).squeeze()
    assert out.shape == (B,), out.shape
    assert jnp.allclose(out, ref, atol=1e-5, rtol=1e-5)

    # --- second check: ragged node tile (in-kernel mask, no HBM pad), non-folded
    # D >= 128 path, and a partial trailing batch tile ---------------------------
    B2, N2, D2 = 3, 12, 128
    k2x, k2q, k2p = jax.random.split(jax.random.PRNGKey(1), 3)
    x2 = jax.random.normal(k2x, (B2, N2, D2), dtype=jnp.float32)
    Q2 = xavier_normal(k2q, (D2, D2))
    P2 = xavier_normal(k2p, (1, D2))
    out2 = jax.block_until_ready(
        graph_readout(x2, Q2, P2, max_x_block_bytes=8 * 1024))
    pooled2 = jnp.sum(x2, axis=1) / N2
    ref2 = (P2 @ jnp.maximum(Q2 @ pooled2.T, 0.0)).squeeze()
    assert out2.shape == (B2,), out2.shape
    assert jnp.allclose(out2, ref2, atol=1e-4, rtol=1e-4)

    print("KERNEL_OK")
</pallas_src>

<mosaic_0001>
module attributes {stable_mosaic.version = 11 : i64} {
  func.func @_readout_kernel(%arg0: i32, %arg1: i32, %arg2: memref<1x2x128xf32, #tpu.memory_space<vmem>>, %arg3: memref<32x32xf32, #tpu.memory_space<vmem>>, %arg4: memref<1x32xf32, #tpu.memory_space<vmem>>, %arg5: memref<1x1x1xf32, #tpu.memory_space<vmem>>, %arg6: memref<1x128xf32, #tpu.memory_space<vmem>>) attributes {dimension_semantics = [#tpu.dimension_semantics<parallel>, #tpu.dimension_semantics<arbitrary>], iteration_bounds = array<i64: 2, 1>, scalar_prefetch = 0 : i64, scratch_operands = 1 : i64, tpu.core_type = #tpu.core_type<tc>, window_params = [{transform_indices = @transform_0, window_bounds = array<i64: 1, 2, 128>}, {pipeline_mode = #tpu.pipeline_mode<synchronous>, transform_indices = @transform_1, window_bounds = array<i64: 32, 32>}, {pipeline_mode = #tpu.pipeline_mode<synchronous>, transform_indices = @transform_2, window_bounds = array<i64: 1, 32>}, {transform_indices = @transform_3, window_bounds = array<i64: 1, 1, 1>}]} {
    %c0_i32 = arith.constant 0 : i32
    %0 = arith.cmpi eq, %arg1, %c0_i32 : i32
    %1 = arith.extui %0 : i1 to i32
    %c0_i32_0 = arith.constant 0 : i32
    %2 = arith.cmpi ne, %1, %c0_i32_0 : i32
    scf.if %2 {
      %cst_9 = arith.constant 0.000000e+00 : f32
      %11 = vector.broadcast %cst_9 : f32 to vector<1x128xf32>
      %c0_10 = arith.constant 0 : index
      %c0_11 = arith.constant 0 : index
      %12 = vector.load %arg6[%c0_10, %c0_11] : memref<1x128xf32, #tpu.memory_space<vmem>>, vector<1x128xf32>
      tpu.vector_store %arg6[%c0_10, %c0_11], %11 {strides = array<i32>} : memref<1x128xf32, #tpu.memory_space<vmem>>, vector<1x128xf32>,
    } else {
    }
    %c0 = arith.constant 0 : index
    %c0_1 = arith.constant 0 : index
    %c0_2 = arith.constant 0 : index
    %3 = vector.load %arg2[%c0, %c0_1, %c0_2] : memref<1x2x128xf32, #tpu.memory_space<vmem>>, vector<1x2x128xf32>
    %c0_3 = arith.constant 0 : index
    %c0_4 = arith.constant 0 : index
    %4 = vector.load %arg6[%c0_3, %c0_4] : memref<1x128xf32, #tpu.memory_space<vmem>>, vector<1x128xf32>
    %cst = arith.constant dense<0.000000e+00> : vector<1x128xf32>
    %5 = vector.multi_reduction <add>, %3, %cst [1] : vector<1x2x128xf32> to vector<1x128xf32>
    %6 = arith.addf %4, %5 : vector<1x128xf32>
    %c0_5 = arith.constant 0 : index
    %c0_6 = arith.constant 0 : index
    %7 = vector.load %arg6[%c0_5, %c0_6] : memref<1x128xf32, #tpu.memory_space<vmem>>, vector<1x128xf32>
    tpu.vector_store %arg6[%c0_5, %c0_6], %6 {strides = array<i32>} : memref<1x128xf32, #tpu.memory_space<vmem>>, vector<1x128xf32>,
    %c0_i32_7 = arith.constant 0 : i32
    %8 = arith.cmpi eq, %arg1, %c0_i32_7 : i32
    %9 = arith.extui %8 : i1 to i32
    %c0_i32_8 = arith.constant 0 : i32
    %10 = arith.cmpi ne, %9, %c0_i32_8 : i32
    scf.if %10 {
      %c0_9 = arith.constant 0 : index
      %c0_10 = arith.constant 0 : index
      %11 = vector.load %arg6[%c0_9, %c0_10] : memref<1x128xf32, #tpu.memory_space<vmem>>, vector<1x128xf32>
      %12 = vector.extract_strided_slice %11 {offsets = [0, 0], sizes = [1, 32], strides = [1, 1]} : vector<1x128xf32> to vector<1x32xf32>
      %13 = vector.extract_strided_slice %11 {offsets = [0, 32], sizes = [1, 32], strides = [1, 1]} : vector<1x128xf32> to vector<1x32xf32>
      %14 = arith.addf %12, %13 : vector<1x32xf32>
      %15 = vector.extract_strided_slice %11 {offsets = [0, 64], sizes = [1, 32], strides = [1, 1]} : vector<1x128xf32> to vector<1x32xf32>
      %16 = arith.addf %14, %15 : vector<1x32xf32>
      %17 = vector.extract_strided_slice %11 {offsets = [0, 96], sizes = [1, 32], strides = [1, 1]} : vector<1x128xf32> to vector<1x32xf32>
      %18 = arith.addf %16, %17 : vector<1x32xf32>
      %cst_11 = arith.constant 1.250000e-01 : f32
      %19 = vector.broadcast %cst_11 : f32 to vector<1x32xf32>
      %20 = arith.mulf %18, %19 : vector<1x32xf32>
      %c0_12 = arith.constant 0 : index
      %c0_13 = arith.constant 0 : index
      %21 = vector.load %arg3[%c0_12, %c0_13] : memref<32x32xf32, #tpu.memory_space<vmem>>, vector<32x32xf32>
      %cst_14 = arith.constant dense<0.000000e+00> : vector<1x32xf32>
      %22 = tpu.matmul %20, %21, %cst_14 {dimension_numbers = #tpu.dot_dimension_numbers<[1], [0], [0], [1], [0, 0, 1, 1], [], []>} : vector<1x32xf32>, vector<32x32xf32>, vector<1x32xf32> -> vector<1x32xf32>
      %cst_15 = arith.constant 0.000000e+00 : f32
      %23 = vector.broadcast %cst_15 : f32 to vector<1x32xf32>
      %24 = arith.maximumf %22, %23 : vector<1x32xf32>
      %c0_16 = arith.constant 0 : index
      %c0_17 = arith.constant 0 : index
      %25 = vector.load %arg4[%c0_16, %c0_17] : memref<1x32xf32, #tpu.memory_space<vmem>>, vector<1x32xf32>
      %26 = arith.mulf %24, %25 : vector<1x32xf32>
      %cst_18 = arith.constant dense<0.000000e+00> : vector<1xf32>
      %27 = vector.multi_reduction <add>, %26, %cst_18 [1] : vector<1x32xf32> to vector<1xf32>
      %28 = vector.shape_cast %27 : vector<1xf32> to vector<1x1xf32>
      %29 = tpu.transpose %28, [1, 0] : vector<1x1xf32> -> vector<1x1xf32>
      %30 = vector.shape_cast %29 : vector<1x1xf32> to vector<1x1x1xf32>
      %c0_19 = arith.constant 0 : index
      %c0_20 = arith.constant 0 : index
      %c0_21 = arith.constant 0 : index
      %31 = vector.load %arg5[%c0_19, %c0_20, %c0_21] : memref<1x1x1xf32, #tpu.memory_space<vmem>>, vector<1x1x1xf32>
      tpu.vector_store %arg5[%c0_19, %c0_20, %c0_21], %30 {strides = array<i32>} : memref<1x1x1xf32, #tpu.memory_space<vmem>>, vector<1x1x1xf32>,
    } else {
    }
    return
  }
  func.func @transform_0(%arg0: i32, %arg1: i32) -> (i32, i32, i32) {
    %c0_i32 = arith.constant 0 : i32
    %c0_i32_0 = arith.constant 0 : i32
    return %arg0, %arg1, %c0_i32 : i32, i32, i32
  }
  func.func @transform_1(%arg0: i32, %arg1: i32) -> (i32, i32) {
    %c0_i32 = arith.constant 0 : i32
    %c0_i32_0 = arith.constant 0 : i32
    %c0_i32_1 = arith.constant 0 : i32
    return %c0_i32, %c0_i32_0 : i32, i32
  }
  func.func @transform_2(%arg0: i32, %arg1: i32) -> (i32, i32) {
    %c0_i32 = arith.constant 0 : i32
    %c0_i32_0 = arith.constant 0 : i32
    %c0_i32_1 = arith.constant 0 : i32
    return %c0_i32, %c0_i32_0 : i32, i32
  }
  func.func @transform_3(%arg0: i32, %arg1: i32) -> (i32, i32, i32) {
    %c0_i32 = arith.constant 0 : i32
    %c0_i32_0 = arith.constant 0 : i32
    %c0_i32_1 = arith.constant 0 : i32
    return %arg0, %c0_i32, %c0_i32_0 : i32, i32, i32
  }
}

</mosaic_0001>

<llo_original>
// kernel: tpu_custom_call.1
$region0: #{tpu_custom_call.1}
  #allocation0 [shape = 'u32[]', space=smem, size = 0x4, offset = 0x4, fixed_abs, tag = 'smem constant byte address 0x4 - core index']
  #allocation1 [shape = 'u32[144,128]{1,0:T(1,128)}', space=vmem, size = 0x12000, scoped, tag = 'internal scratch']
  #allocation2 [shape = 'f32[1,128]{1,0:T(1,128)}', space=vmem, size = 0x200, scoped, tag = 'scratch operand']
  %s0 = inlined_call_operand.hbm [shape: f32[2,2,128], index: 0, kind: input, shape index: {}]
  %s1 = inlined_call_operand.hbm [shape: f32[32,32], index: 1, kind: input, shape index: {}]
  %s2 = inlined_call_operand.vmem [shape: f32[1,32], index: 2, kind: input, shape index: {}]
  %s3 = inlined_call_operand.vmem [shape: f32[2,1,1], index: 3, kind: output, shape index: {}]
  %s4 = sld [smem:[#allocation0]]
  $region61: #{tpu_custom_call.1} parent=0
    _
  %s6 = ssub.s32 1, %s4
  %s7 = scalar_select 0, %s6, %s4
  $region1: #{tpu_custom_call.1} parent=0
    #allocation3 [shape = 'u8[2048]{0}', space=vmem, size = 0x800, scoped, tag = 'input window, operand 0']
    #allocation4 [shape = 's32[2]{0}', space=sflag, size = 0x8, scoped, tag = 'scoped memory for tpu_custom_call.1']
    #allocation5 [shape = 'u8[16384]{0}', space=vmem, size = 0x4000, scoped, tag = 'input window, operand 1, single buffered']
    #allocation6 [shape = 's32[1]{0}', space=sflag, size = 0x4, scoped, tag = 'scoped memory for tpu_custom_call.1']
    %8 = vsyncpa [#allocation4], 0
    %s9 = scalar_lea.sflag [#allocation4], 1
    %10 = vsyncpa %s9, 0
    %11 = vsyncpa [#allocation6], 0
    loop: start=0, step=1, limit=4
    $region2: #{tpu_custom_call.1} parent=1 // loop_pre_header
      _
    $region3: #{tpu_custom_call.1} parent=1 // loop_header
      %s13 = sphi 0, %s17
      %p14 = scmp.ge.s32.totalorder %s13, 4
      %s20 = sphi 0, %s32
      %s21 = sphi 0, %s28
      %s22 = sphi 0, %s20
      %s23 = sphi 0, %s21
      %s24 = sphi 0, %s22
      %s25 = sphi 0, %s23
      %s37 = sphi 0, %s39
      %s40 = sphi 0, %s37
      %s41 = sphi 0, %s40
      %s57 = sphi 0, %s41
      %s61 = sphi 0, %s61
      %s63 = sphi 0, %s61
      %s64 = sphi 0, %s63
      %s78 = sphi 0, %s64
      %s82 = sphi 0, %s82
      %s84 = sphi 0, %s82
      %s85 = sphi 0, %s84
      %s99 = sphi 0, %s85
      %s105 = sphi 0, %s107
      %s108 = sphi 0, %s105
      %s109 = sphi 0, %s108
      %s125 = sphi 0, %s109
    $region4: #{tpu_custom_call.1} parent=1 // loop_header_branch
      %16 = sbr.rel (%p14) target = $region8
    $region5: #{tpu_custom_call.1} parent=1 // loop_body
      %s18 = ssub.s32 %s13, 1
      %s19 = ssub.s32 %s13, 2
      %s26 = sadd.s32 1, %s21
      %p27 = scmp.ge.s32.totalorder %s26, 1
      %s28 = scalar_select %p27, 0, %s26
      %s29 = sadd.s32 1, %s20
      %s30 = scalar_select %p27, %s29, %s20
      %p31 = scmp.ge.s32.totalorder %s30, 2
      %s32 = scalar_select %p31, 0, %s30
      %s33 = ssub.s32 %s20, %s32
      %s34 = ssub.s32 %s21, %s28
      %s35 = sor.u32 %s33, %s34
      %p36 = scmp.eq.s32.totalorder %s35, 0
      %s38 = sadd.s32 %s37, 1
      %s39 = scalar_select %p36, %s37, %s38
      %p42 = pneg %p36
      %p43 = scmp.eq.s32.totalorder %s13, 1
      %p44 = por %p42, %p43
      %p45 = scmp.ne.s32.totalorder %s37, %s40
      %p46 = scmp.eq.s32.totalorder %s13, 0
      %p47 = por %p45, %p46
      %p48 = scmp.ne.s32.totalorder %s37, %s40
      %p49 = scmp.eq.s32.totalorder %s18, 1
      %p50 = por %p48, %p49
      %p51 = scmp.ne.s32.totalorder %s40, %s41
      %p52 = scmp.eq.s32.totalorder %s18, 0
      %p53 = por %p51, %p52
      %p54 = scmp.ne.s32.totalorder %s40, %s41
      %p55 = scmp.eq.s32.totalorder %s19, 1
      %p56 = por %p54, %p55
      %p58 = scmp.ne.s32.totalorder %s41, %s57
      %p59 = scmp.eq.s32.totalorder %s19, 0
      %p60 = por %p58, %p59
      %s62 = sadd.s32 %s61, 1
      %p65 = scmp.eq.s32.totalorder %s13, 1
      %p66 = scmp.ne.s32.totalorder %s61, %s63
      %p67 = scmp.eq.s32.totalorder %s13, 0
      %p68 = por %p66, %p67
      %p69 = scmp.ne.s32.totalorder %s61, %s63
      %p70 = scmp.eq.s32.totalorder %s18, 1
      %p71 = por %p69, %p70
      %p72 = scmp.ne.s32.totalorder %s63, %s64
      %p73 = scmp.eq.s32.totalorder %s18, 0
      %p74 = por %p72, %p73
      %p75 = scmp.ne.s32.totalorder %s63, %s64
      %p76 = scmp.eq.s32.totalorder %s19, 1
      %p77 = por %p75, %p76
      %p79 = scmp.ne.s32.totalorder %s64, %s78
      %p80 = scmp.eq.s32.totalorder %s19, 0
      %p81 = por %p79, %p80
      %s83 = sadd.s32 %s82, 1
      %p86 = scmp.eq.s32.totalorder %s13, 1
      %p87 = scmp.ne.s32.totalorder %s82, %s84
      %p88 = scmp.eq.s32.totalorder %s13, 0
      %p89 = por %p87, %p88
      %p90 = scmp.ne.s32.totalorder %s82, %s84
      %p91 = scmp.eq.s32.totalorder %s18, 1
      %p92 = por %p90, %p91
      %p93 = scmp.ne.s32.totalorder %s84, %s85
      %p94 = scmp.eq.s32.totalorder %s18, 0
      %p95 = por %p93, %p94
      %p96 = scmp.ne.s32.totalorder %s84, %s85
      %p97 = scmp.eq.s32.totalorder %s19, 1
      %p98 = por %p96, %p97
      %p100 = scmp.ne.s32.totalorder %s85, %s99
      %p101 = scmp.eq.s32.totalorder %s19, 0
      %p102 = por %p100, %p101
      %s103 = ssub.s32 %s20, %s32
      %p104 = scmp.eq.s32.totalorder %s103, 0
      %s106 = sadd.s32 %s105, 1
      %s107 = scalar_select %p104, %s105, %s106
      %p110 = pneg %p104
      %p111 = scmp.eq.s32.totalorder %s13, 1
      %p112 = por %p110, %p111
      %p113 = scmp.ne.s32.totalorder %s105, %s108
      %p114 = scmp.eq.s32.totalorder %s13, 0
      %p115 = por %p113, %p114
      %p116 = scmp.ne.s32.totalorder %s105, %s108
      %p117 = scmp.eq.s32.totalorder %s18, 1
      %p118 = por %p116, %p117
      %p119 = scmp.ne.s32.totalorder %s108, %s109
      %p120 = scmp.eq.s32.totalorder %s18, 0
      %p121 = por %p119, %p120
      %p122 = scmp.ne.s32.totalorder %s108, %s109
      %p123 = scmp.eq.s32.totalorder %s19, 1
      %p124 = por %p122, %p123
      %p126 = scmp.ne.s32.totalorder %s109, %s125
      %p127 = scmp.eq.s32.totalorder %s19, 0
      %p128 = por %p126, %p127
      %p129 = scmp.le.s32.totalorder 1, %s13
      %p130 = scmp.lt.s32.totalorder %s13, 3
      %p131 = pnand %p129, %p130
      %p132 = pneg %p131
      // Predicated region
      $region9: #{tpu_custom_call.1} parent=5 // pred_check
        _
      $region10: #{tpu_custom_call.1} parent=5 // pred_check_branch
        %134 = sbr.rel (%p131) target = $region12
      $region11: #{tpu_custom_call.1} parent=5 // pred_region
        %s135 = ssub.s32 %s13, 1
        // Predicated region
        $region13: #{tpu_custom_call.1} parent=11 // pred_check
          %p136 = pneg %p74
        $region14: #{tpu_custom_call.1} parent=11 // pred_check_branch
          %138 = sbr.rel (%p136) target = $region16
        $region15: #{tpu_custom_call.1} parent=11 // pred_region
          %s140 = ssub.s32 512, 512
          %141 = vsyncadd [#allocation6], %s140
          %s142 = sshll.u32 [#allocation5], 4
          %s143 = int_to_ptr.vmem [resolvable:$true] %s142
          %148 = dma.hbm_to_vmem [thread:$0]  %s1, 512, %s143, [#allocation6], 128, 128, 8
        $region16: #{tpu_custom_call.1} parent=11 // pred_fallthru
          _
        // Predicated region
        $region17: #{tpu_custom_call.1} parent=11 // pred_check
          %p149 = pneg %p95
        $region18: #{tpu_custom_call.1} parent=11 // pred_check_branch
          %151 = sbr.rel (%p149) target = $region20
        $region19: #{tpu_custom_call.1} parent=11 // pred_region
          _
        $region20: #{tpu_custom_call.1} parent=11 // pred_fallthru
          _
      $region12: #{tpu_custom_call.1} parent=5 // pred_fallthru
        _
      %p152 = scmp.lt.s32.totalorder %s13, 2
      // Predicated region
      $region21: #{tpu_custom_call.1} parent=5 // pred_check
        %p153 = pneg %p152
      $region22: #{tpu_custom_call.1} parent=5 // pred_check_branch
        %155 = sbr.rel (%p153) target = $region24
      $region23: #{tpu_custom_call.1} parent=5 // pred_region
        // Predicated region
        $region25: #{tpu_custom_call.1} parent=23 // pred_check
          %p156 = pneg %p47
        $region26: #{tpu_custom_call.1} parent=23 // pred_check_branch
          %158 = sbr.rel (%p156) target = $region28
        $region27: #{tpu_custom_call.1} parent=23 // pred_region
          %s159 = sand.u32 %s37, 1
          %s160 = scalar_lea.sflag [#allocation4], %s159
          %s161 = sand.u32 %s37, 1
          %s162 = smul.addr %s161, 2
          %s163 = scalar_lea.vmem [#allocation3], %s162
          %s165 = ssub.s32 32, 32
          %166 = vsyncadd %s160, %s165
          %s167 = sadd.s32 %s21, %s20
          %s168 = smul.addr %s167, 32
          %s169 = scalar_lea.hbm %s0, %s168
          %s171 = sshll.u32 %s163, 4
          %s172 = int_to_ptr.vmem [resolvable:$true] %s171
          %174 = dma.hbm_to_vmem [thread:$0]  %s169, 32, %s172, %s160
        $region28: #{tpu_custom_call.1} parent=23 // pred_fallthru
          _
      $region24: #{tpu_custom_call.1} parent=5 // pred_fallthru
        _
      %p175 = scmp.le.s32.totalorder 1, %s13
      %p176 = scmp.lt.s32.totalorder %s13, 3
      %p177 = pnand %p175, %p176
      %p178 = pneg %p177
      // Predicated region
      $region29: #{tpu_custom_call.1} parent=5 // pred_check
        _
      $region30: #{tpu_custom_call.1} parent=5 // pred_check_branch
        %180 = sbr.rel (%p177) target = $region32
      $region31: #{tpu_custom_call.1} parent=5 // pred_region
        %s181 = ssub.s32 %s13, 1
        %s182 = sand.u32 %s40, 1
        %s183 = scalar_lea.sflag [#allocation4], %s182
        %s184 = sand.u32 %s40, 1
        %s185 = smul.addr %s184, 2
        %s186 = scalar_lea.vmem [#allocation3], %s185
        // Predicated region
        $region33: #{tpu_custom_call.1} parent=31 // pred_check
          %p187 = pneg %p53
        $region34: #{tpu_custom_call.1} parent=31 // pred_check_branch
          %189 = sbr.rel (%p187) target = $region36
        $region35: #{tpu_custom_call.1} parent=31 // pred_region
          %190 = dma.done %s183, 32
        $region36: #{tpu_custom_call.1} parent=31 // pred_fallthru
          _
        // Predicated region
        $region37: #{tpu_custom_call.1} parent=31 // pred_check
          %p191 = pneg %p74
        $region38: #{tpu_custom_call.1} parent=31 // pred_check_branch
          %193 = sbr.rel (%p191) target = $region40
        $region39: #{tpu_custom_call.1} parent=31 // pred_region
          %194 = dma.done [#allocation6], 512
        $region40: #{tpu_custom_call.1} parent=31 // pred_fallthru
          _
        %s195 = sand.u32 %s40, 1
        %s196 = scalar_lea.sflag [#allocation4], %s195
        %s197 = sand.u32 %s40, 1
        %s198 = smul.addr %s197, 2
        %s199 = scalar_lea.vmem [#allocation3], %s198
        %p200 = pneg %p53
        %p201 = pneg %p50
        %p202 = pneg %p74
        %p203 = pneg %p71
        %p204 = pneg %p95
        %p205 = pneg %p92
        %p206 = pneg %p121
        %p207 = pneg %p118
        %p208 = scmp.lt.s32.totalorder %s22, 1
        %s209 = scalar_select %p208, %s22, 1
        %s210 = scalar_lea.vmem %s3, %s209
        %p211 = scmp.lt.s32.totalorder %s22, 1
        %s212 = scalar_select %p211, %s22, 1
        %s213 = scalar_lea.vmem %s3, %s212
        %p214 = scmp.eq.s32.totalorder %s23, 0
        // Predicated region
        $region41: #{tpu_custom_call.1} parent=31 // pred_check
          %p215 = pneg %p214
        $region42: #{tpu_custom_call.1} parent=31 // pred_check_branch
          %217 = sbr.rel (%p215) target = $region44
        $region43: #{tpu_custom_call.1} parent=31 // pred_region
          %218 = vst [vmem:[#allocation2] sm:$0x1] 0.0
        $region44: #{tpu_custom_call.1} parent=31 // pred_fallthru
          _
        %v219 = vld [vmem:[%s186] sm:$0x3]
        %v220 = vld [vmem:[#allocation2] sm:$0x1]
        %vm221 = vcmask 1041408
        %v222 = vsel %vm221, %v219, 0.0
        %v223 = vrot.slane %v222, 4
        %v224 = vadd.f32 %v222, %v223
        %v225 = vrot.slane %v224, 2
        %v226 = vadd.f32 %v224, %v225
        %v227 = vrot.slane %v226, 1
        %v228 = vadd.f32 %v226, %v227
        %v229 = vadd.f32 %v220, %v228
        %230 = vst [vmem:[#allocation2] sm:$0x1] %v229
        // Predicated region
        $region45: #{tpu_custom_call.1} parent=31 // pred_check
          %p231 = pneg %p214
        $region46: #{tpu_custom_call.1} parent=31 // pred_check_branch
          %233 = sbr.rel (%p231) target = $region48
        $region47: #{tpu_custom_call.1} parent=31 // pred_region
          %v234 = vld [vmem:[#allocation2] sm:$0x1]
          %236 = vrot.lane.b32.xlu0 %v234, 96
          %v237 = vpop.permute.xlu0 %236
          %v239 = vadd.f32 %v234, %v237
          %240 = vrot.lane.b32.xlu0 %v234, 64
          %v241 = vpop.permute.xlu0 %240
          %v243 = vadd.f32 %v239, %v241
          %244 = vrot.lane.b32.xlu0 %v234, 32
          %v245 = vpop.permute.xlu0 %244
          %v247 = vadd.f32 %v243, %v245
          %v248 = vmul.f32 %v247, 0.125
          %v249 = vld [vmem:[#allocation5] sm:$0xff]
          %v250 = vld [vmem:[#allocation5 + $0x8] sm:$0xff]
          %v251 = vld [vmem:[#allocation5 + $0x10] sm:$0xff]
          %v252 = vld [vmem:[#allocation5 + $0x18] sm:$0xff]
          %vm253 = vcmask 261120
          %v255 = vsel %vm253, %v248, 0
          %257 = vmatprep.subr.mxu0 0.0
          %258 = vmatpush1.msra.mxu0 %v249
          %259 = vmatprep.subr.mxu0 0.0
          %260 = vmatpush1.msra.mxu0 %v250
          %261 = vmatprep.subr.mxu0 0.0
          %262 = vmatpush1.msra.mxu0 %v251
          %263 = vmatprep.subr.mxu0 0.0
          %264 = vmatpush1.msra.mxu0 %v252
          %265 = vmatprep.subr.mxu0 0.0
          %266 = vmatpush1.msra.mxu0 0.0
          %267 = vmatprep.subr.mxu0 0.0
          %268 = vmatpush1.msra.mxu0 0.0
          %269 = vmatprep.subr.mxu0 0.0
          %270 = vmatpush1.msra.mxu0 0.0
          %271 = vmatprep.subr.mxu0 0.0
          %272 = vmatpush1.msra.mxu0 0.0
          %273 = vmatprep.subr.mxu0 0.0
          %274 = vmatpush1.msra.mxu0 0.0
          %275 = vmatprep.subr.mxu0 0.0
          %276 = vmatpush1.msra.mxu0 0.0
          %277 = vmatprep.subr.mxu0 0.0
          %278 = vmatpush1.msra.mxu0 0.0
          %279 = vmatprep.subr.mxu0 0.0
          %280 = vmatpush1.msra.mxu0 0.0
          %281 = vmatprep.subr.mxu0 0.0
          %282 = vmatpush1.msra.mxu0 0.0
          %283 = vmatprep.subr.mxu0 0.0
          %284 = vmatpush1.msra.mxu0 0.0
          %285 = vmatprep.subr.mxu0 0.0
          %286 = vmatpush1.msra.mxu0 0.0
          %287 = vmatprep.subr.mxu0 0.0
          %288 = vmatpush1.msra.mxu0 0.0
          %289 = vmatprep.subr.mxu0 0.0
          %290 = vmatpush1.msra.mxu0 0.0
          %291 = vmatprep.subr.mxu0 0.0
          %292 = vmatpush1.msra.mxu0 0.0
          %293 = vmatprep.subr.mxu0 0.0
          %294 = vmatpush1.msra.mxu0 0.0
          %295 = vmatprep.subr.mxu0 0.0
          %296 = vmatpush1.msra.mxu0 0.0
          %297 = vmatprep.subr.mxu0 0.0
          %298 = vmatpush1.msra.mxu0 0.0
          %299 = vmatprep.subr.mxu0 0.0
          %300 = vmatpush1.msra.mxu0 0.0
          %301 = vmatprep.subr.mxu0 0.0
          %302 = vmatpush1.msra.mxu0 0.0
          %303 = vmatprep.subr.mxu0 0.0
          %304 = vmatpush1.msra.mxu0 0.0
          %305 = vmatprep.subr.mxu0 0.0
          %306 = vmatpush1.msra.mxu0 0.0
          %307 = vmatprep.subr.mxu0 0.0
          %308 = vmatpush1.msra.mxu0 0.0
          %309 = vmatprep.subr.mxu0 0.0
          %310 = vmatpush1.msra.mxu0 0.0
          %311 = vmatprep.subr.mxu0 0.0
          %312 = vmatpush1.msra.mxu0 0.0
          %313 = vmatprep.subr.mxu0 0.0
          %314 = vmatpush1.msra.mxu0 0.0
          %315 = vmatprep.subr.mxu0 0.0
          %316 = vmatpush1.msra.mxu0 0.0
          %317 = vmatprep.subr.mxu0 0.0
          %318 = vmatpush1.msra.mxu0 0.0
          %319 = vmatprep.subr.mxu0 0.0
          %320 = vmatpush1.msra.mxu0 0.0
          %321 = vmatprep.mubr.f32.mxu0 0.0
          %322 = vmatmul.mubr.f32.gmra.mrb[0].mxu0 %v255
          %v323 = vpop.f32.mrb[0].mxu0
          %v324 = vadd.f32 0.0, %v323
          %v325 = vpop.f32.mrb[0].mxu0
          %326 = vdwg.mxu0
          %v327 = vmax.f32 %v324, 0.0
          %v328 = vld [vmem:[%s2] sm:$0x1]
          %v329 = vmul.f32 %v327, %v328
          %vm330 = vcmask 253952
          %v331 = vsel %vm330, %v329, 0.0
          %332 = vadd.xlane.f32.xlu0 %v331
          %v333 = vpop.xlane.xlu0 %332
          %334 = vxpose.xlu0.b32.start [1/16] %v333, 128
          %335 = vxpose.xlu0.b32.cont [2/16] 0.0, 128
          %336 = vxpose.xlu0.b32.cont [3/16] 0.0, 128
          %337 = vxpose.xlu0.b32.cont [4/16] 0.0, 128
          %338 = vxpose.xlu0.b32.cont [5/16] 0.0, 128
          %339 = vxpose.xlu0.b32.cont [6/16] 0.0, 128
          %340 = vxpose.xlu0.b32.cont [7/16] 0.0, 128
          %341 = vxpose.xlu0.b32.cont [8/16] 0.0, 128
          %342 = vxpose.xlu0.b32.cont [9/16] 0.0, 128
          %343 = vxpose.xlu0.b32.cont [10/16] 0.0, 128
          %344 = vxpose.xlu0.b32.cont [11/16] 0.0, 128
          %345 = vxpose.xlu0.b32.cont [12/16] 0.0, 128
          %346 = vxpose.xlu0.b32.cont [13/16] 0.0, 128
          %347 = vxpose.xlu0.b32.cont [14/16] 0.0, 128
          %348 = vxpose.xlu0.b32.cont [15/16] 0.0, 128
          %349 = vxpose.xlu0.b32.end [16/16] 0.0, 128
          %v350 = vpop.trf.xlu0
          %v351 = vpop.trf.xlu0
          %v352 = vpop.trf.xlu0
          %v353 = vpop.trf.xlu0
          %v354 = vpop.trf.xlu0
          %v355 = vpop.trf.xlu0
          %v356 = vpop.trf.xlu0
          %v357 = vpop.trf.xlu0
          %v358 = vpop.trf.xlu0
          %v359 = vpop.trf.xlu0
          %v360 = vpop.trf.xlu0
          %v361 = vpop.trf.xlu0
          %v362 = vpop.trf.xlu0
          %v363 = vpop.trf.xlu0
          %v364 = vpop.trf.xlu0
          %v365 = vpop.trf.xlu0
          %vm366 = vcmask 0
          %367 = vst.msk [vmem:[%s213] sm:$0x1] %vm366, %v350
        $region48: #{tpu_custom_call.1} parent=31 // pred_fallthru
          _
        %p368 = scmp.lt.s32.totalorder %s22, 1
        %s369 = scalar_select %p368, %s22, 1
        %s370 = scalar_lea.vmem %s3, %s369
        // Predicated region
        $region49: #{tpu_custom_call.1} parent=31 // pred_check
          %p371 = pneg %p118
        $region50: #{tpu_custom_call.1} parent=31 // pred_check_branch
          %373 = sbr.rel (%p371) target = $region52
        $region51: #{tpu_custom_call.1} parent=31 // pred_region
          _
        $region52: #{tpu_custom_call.1} parent=31 // pred_fallthru
          _
      $region32: #{tpu_custom_call.1} parent=5 // pred_fallthru
        _
      %p374 = scmp.le.s32.totalorder 2, %s13
      // Predicated region
      $region53: #{tpu_custom_call.1} parent=5 // pred_check
        %p375 = pneg %p374
      $region54: #{tpu_custom_call.1} parent=5 // pred_check_branch
        %377 = sbr.rel (%p375) target = $region56
      $region55: #{tpu_custom_call.1} parent=5 // pred_region
        %s378 = ssub.s32 %s13, 2
        // Predicated region
        $region57: #{tpu_custom_call.1} parent=55 // pred_check
          %p379 = pneg %p124
        $region58: #{tpu_custom_call.1} parent=55 // pred_check_branch
          %381 = sbr.rel (%p379) target = $region60
        $region59: #{tpu_custom_call.1} parent=55 // pred_region
          %p382 = scmp.lt.s32.totalorder %s24, 1
          %s383 = scalar_select %p382, %s24, 1
          %s384 = scalar_lea.vmem %s3, %s383
        $region60: #{tpu_custom_call.1} parent=55 // pred_fallthru
          _
      $region56: #{tpu_custom_call.1} parent=5 // pred_fallthru
        _
    $region6: #{tpu_custom_call.1} parent=1 // loop_footer
      %s17 = sadd.s32 1, %s13
    $region7: #{tpu_custom_call.1} parent=1 // loop_footer_branch
      %12 = sbr.rel target = $region3
    $region8: #{tpu_custom_call.1} parent=1 // loop_exit
      _
    %385 = vsyncpa [#allocation4], 1
    %s386 = scalar_lea.sflag [#allocation4], 1
    %387 = vsyncpa %s386, 1
    %388 = vsyncpa [#allocation6], 1

</llo_original>
